<compile_context>
chip_gen: v7x
topology: tpu7x:2x2x1
jax: 0.10.0
libtpu: 0.0.40
codegen_flags: <defaults>
</compile_context>

<pallas_src>
import jax
import jax.numpy as jnp
from jax.experimental import pallas as pl
from jax.experimental.pallas import tpu as pltpu

_EPS = 1e-12  # guards rsqrt against zero rows (incl. zero-padded rows)


# ----------------------------------------------------------------------------
# Kernel 1: default (minimize_loss=False) path, tiled over rows.
#   D(p, z) = mean_i <p_i/||p_i||, z_i/||z_i||>
#   loss    = -0.5 * (D(p1, z2) + D(p2, z1))
# ----------------------------------------------------------------------------
def _make_plain_kernel(inv_n):
    def kernel(p1_ref, z2_ref, p2_ref, z1_ref, out_ref, acc_ref):
        i = pl.program_id(0)

        @pl.when(i == 0)
        def _():
            acc_ref[...] = jnp.zeros_like(acc_ref)

        def cos_rows(p_ref, z_ref):
            p = p_ref[...].astype(jnp.float32)
            z = z_ref[...].astype(jnp.float32)          # z.detach(): forward-identical
            s_pz = jnp.sum(p * z, axis=-1, keepdims=True)
            s_pp = jnp.sum(p * p, axis=-1, keepdims=True)
            s_zz = jnp.sum(z * z, axis=-1, keepdims=True)
            # fused cosine: no normalized copies, no divides (rsqrt -> EUP)
            return s_pz * jax.lax.rsqrt(jnp.maximum(s_pp * s_zz, _EPS))

        rows = cos_rows(p1_ref, z2_ref) + cos_rows(p2_ref, z1_ref)   # (TM, 1)
        acc_ref[...] += jnp.sum(rows, axis=0, keepdims=True)         # (1, 1)

        @pl.when(i == pl.num_programs(0) - 1)
        def _():
            out_ref[...] = acc_ref[...] * (-0.5 * inv_n)

    return kernel


# ----------------------------------------------------------------------------
# Kernel 2: minimize_loss=True path, tiled over batch.
#   D_minimize(p, z) = mean_b mean_s max_t <p_bs/||p_bs||, z_bt/||z_bt||>
#   loss             = -0.5 * (D_minimize(p1, z2) + D_minimize(p2, z1))
# ----------------------------------------------------------------------------
def _make_minimize_kernel(inv_b, inv_s):
    def kernel(p1_ref, z2_ref, p2_ref, z1_ref, out_ref, acc_ref):
        b = pl.program_id(0)

        @pl.when(b == 0)
        def _():
            acc_ref[...] = jnp.zeros_like(acc_ref)

        def d_batch(p_ref, z_ref):
            p = p_ref[...]                               # (1, S, Dm), input dtype
            z = z_ref[...]                               # (1, T, Dm), input dtype
            # z-normalization must happen BEFORE the max (does not commute).
            zf = z.astype(jnp.float32)
            z_scale = jax.lax.rsqrt(
                jnp.maximum(jnp.sum(zf * zf, axis=-1, keepdims=True), _EPS))
            z_n = (zf * z_scale).astype(p.dtype)         # keep MXU operand dtype
            # TODO(synk): for very large T, switch to a running max over T-tiles
            # instead of materializing the full [1, S, T] similarity block.
            sim = jnp.einsum("bsd,btd->bst", p, z_n,
                             preferred_element_type=jnp.float32)     # (1, S, T)
            m = jnp.max(sim, axis=-1)                                 # (1, S)
            # p-normalization deferred past the max (positive scale commutes).
            pf = p.astype(jnp.float32)
            p_scale = jax.lax.rsqrt(
                jnp.maximum(jnp.sum(pf * pf, axis=-1), _EPS))         # (1, S)
            cos = m * p_scale                                         # (1, S)
            return jnp.sum(cos, axis=-1, keepdims=True) * inv_s       # (1, 1)

        acc_ref[...] += d_batch(p1_ref, z2_ref) + d_batch(p2_ref, z1_ref)

        @pl.when(b == pl.num_programs(0) - 1)
        def _():
            out_ref[...] = acc_ref[...] * (-0.5 * inv_b)

    return kernel


def _choose_tile_rows(n, d, itemsize):
    """Largest multiple-of-8 row tile s.t. 4 inputs x 2 buffers stay < ~20 MiB."""
    budget = 20 * 1024 * 1024
    tm = budget // (4 * 2 * d * itemsize)
    tm = max(8, min(1024, (tm // 8) * 8))
    n_pad8 = ((n + 7) // 8) * 8
    tm = min(tm, n_pad8)
    return max(8, (tm // 8) * 8)


def simsiam_loss(p1, z1, p2, z2, minimize_loss=False):
    """SimsiamLoss(symmetry=True).forward(p1, z1, p2, z2, minimize_loss).

    Forward-pass only (z.detach() is value-identical in the forward).
    """
    compiler_params = pltpu.CompilerParams(
        dimension_semantics=("arbitrary",),          # reduction-accumulator axis
        vmem_limit_bytes=32 * 1024 * 1024,
    )

    if minimize_loss:
        assert p1.ndim == 3, "minimize path expects [B, S, Dm] inputs"
        B, S, Dm = p1.shape
        kernel = _make_minimize_kernel(1.0 / B, 1.0 / S)
        spec = pl.BlockSpec((1, S, Dm), lambda b: (b, 0, 0))
        grid = (B,)
        args = (p1, z2, p2, z1)
        out_map = lambda b: (0, 0)
    else:
        assert p1.ndim == 2, "default path expects [N, Dm] inputs"
        N, Dm = p1.shape
        itemsize = jnp.dtype(p1.dtype).itemsize
        tm = _choose_tile_rows(N, Dm, itemsize)
        n_pad = ((N + tm - 1) // tm) * tm
        if n_pad != N:
            # Zero-padded rows contribute exactly 0 (s_pz = 0, eps keeps rsqrt finite).
            pad = ((0, n_pad - N), (0, 0))
            p1, z2, p2, z1 = (jnp.pad(a, pad) for a in (p1, z2, p2, z1))
        kernel = _make_plain_kernel(1.0 / N)         # divide by true N, not padded
        spec = pl.BlockSpec((tm, Dm), lambda i: (i, 0))
        grid = (n_pad // tm,)
        args = (p1, z2, p2, z1)
        out_map = lambda i: (0, 0)

    out = pl.pallas_call(
        kernel,
        out_shape=jax.ShapeDtypeStruct((1, 1), jnp.float32),
        grid=grid,
        in_specs=[spec, spec, spec, spec],
        out_specs=pl.BlockSpec((1, 1), out_map),
        scratch_shapes=[pltpu.VMEM((1, 1), jnp.float32)],
        compiler_params=compiler_params,
    )(*args)
    return out[0, 0]


# ----------------------------------------------------------------------------
# Pure-JAX references for sanity checking
# ----------------------------------------------------------------------------
def _ref_D(p, z):
    p = p / jnp.linalg.norm(p, axis=-1, keepdims=True)
    z = z / jnp.linalg.norm(z, axis=-1, keepdims=True)
    return jnp.mean(jnp.sum(p * z, axis=1))


def _ref_D_minimize(p, z):
    p = p / jnp.linalg.norm(p, axis=-1, keepdims=True)
    z = z / jnp.linalg.norm(z, axis=-1, keepdims=True)
    sim = jnp.einsum("bsd,btd->bst", p, z)
    return jnp.mean(jnp.mean(jnp.max(sim, axis=-1), axis=-1))


def _ref_loss(p1, z1, p2, z2, minimize_loss=False):
    if minimize_loss:
        return -0.5 * (_ref_D_minimize(p1, z2) + _ref_D_minimize(p2, z1))
    return -0.5 * (_ref_D(p1, z2) + _ref_D(p2, z1))


if __name__ == "__main__":
    key = jax.random.PRNGKey(0)
    k1, k2, k3, k4, k5, k6, k7, k8 = jax.random.split(key, 8)

    # --- default (minimize_loss=False) path: [N, Dm] ---
    N, Dm = 8, 32
    p1 = jax.random.normal(k1, (N, Dm), jnp.float32)
    z1 = jax.random.normal(k2, (N, Dm), jnp.float32)
    p2 = jax.random.normal(k3, (N, Dm), jnp.float32)
    z2 = jax.random.normal(k4, (N, Dm), jnp.float32)

    loss = simsiam_loss(p1, z1, p2, z2, minimize_loss=False)
    jax.block_until_ready(loss)
    ref = _ref_loss(p1, z1, p2, z2, minimize_loss=False)
    assert jnp.allclose(loss, ref, atol=1e-5, rtol=1e-5), (loss, ref)

    # --- minimize_loss=True path: [B, S, Dm] ---
    B, S = 2, 8
    p1m = jax.random.normal(k5, (B, S, Dm), jnp.float32)
    z1m = jax.random.normal(k6, (B, S, Dm), jnp.float32)
    p2m = jax.random.normal(k7, (B, S, Dm), jnp.float32)
    z2m = jax.random.normal(k8, (B, S, Dm), jnp.float32)

    loss_min = simsiam_loss(p1m, z1m, p2m, z2m, minimize_loss=True)
    jax.block_until_ready(loss_min)
    ref_min = _ref_loss(p1m, z1m, p2m, z2m, minimize_loss=True)
    assert jnp.allclose(loss_min, ref_min, atol=1e-5, rtol=1e-5), (loss_min, ref_min)

    print("KERNEL_OK")
</pallas_src>

<mosaic_0001>
module attributes {stable_mosaic.version = 11 : i64} {
  func.func @kernel(%arg0: i32, %arg1: memref<8x32xf32, #tpu.memory_space<vmem>>, %arg2: memref<8x32xf32, #tpu.memory_space<vmem>>, %arg3: memref<8x32xf32, #tpu.memory_space<vmem>>, %arg4: memref<8x32xf32, #tpu.memory_space<vmem>>, %arg5: memref<1x1xf32, #tpu.memory_space<vmem>>, %arg6: memref<1x1xf32, #tpu.memory_space<vmem>>) attributes {dimension_semantics = [#tpu.dimension_semantics<arbitrary>], iteration_bounds = array<i64: 1>, scalar_prefetch = 0 : i64, scratch_operands = 1 : i64, tpu.core_type = #tpu.core_type<tc>, window_params = [{transform_indices = @transform_0, window_bounds = array<i64: 8, 32>}, {transform_indices = @transform_1, window_bounds = array<i64: 8, 32>}, {transform_indices = @transform_2, window_bounds = array<i64: 8, 32>}, {transform_indices = @transform_3, window_bounds = array<i64: 8, 32>}, {pipeline_mode = #tpu.pipeline_mode<synchronous>, transform_indices = @transform_4, window_bounds = array<i64: 1, 1>}]} {
    %c0_i32 = arith.constant 0 : i32
    %0 = arith.cmpi eq, %arg0, %c0_i32 : i32
    %1 = arith.extui %0 : i1 to i32
    %c0_i32_0 = arith.constant 0 : i32
    %2 = arith.cmpi ne, %1, %c0_i32_0 : i32
    scf.if %2 {
      %cst_22 = arith.constant 0.000000e+00 : f32
      %44 = vector.broadcast %cst_22 : f32 to vector<1x1xf32>
      %c0_23 = arith.constant 0 : index
      %c0_24 = arith.constant 0 : index
      %45 = vector.load %arg6[%c0_23, %c0_24] : memref<1x1xf32, #tpu.memory_space<vmem>>, vector<1x1xf32>
      tpu.vector_store %arg6[%c0_23, %c0_24], %44 {strides = array<i32>} : memref<1x1xf32, #tpu.memory_space<vmem>>, vector<1x1xf32>,
    } else {
    }
    %c0 = arith.constant 0 : index
    %c0_1 = arith.constant 0 : index
    %3 = vector.load %arg1[%c0, %c0_1] : memref<8x32xf32, #tpu.memory_space<vmem>>, vector<8x32xf32>
    %c0_2 = arith.constant 0 : index
    %c0_3 = arith.constant 0 : index
    %4 = vector.load %arg2[%c0_2, %c0_3] : memref<8x32xf32, #tpu.memory_space<vmem>>, vector<8x32xf32>
    %5 = arith.mulf %3, %4 : vector<8x32xf32>
    %cst = arith.constant dense<0.000000e+00> : vector<8xf32>
    %6 = vector.multi_reduction <add>, %5, %cst [1] : vector<8x32xf32> to vector<8xf32>
    %7 = vector.shape_cast %6 : vector<8xf32> to vector<8x1xf32>
    %8 = arith.mulf %3, %3 : vector<8x32xf32>
    %cst_4 = arith.constant dense<0.000000e+00> : vector<8xf32>
    %9 = vector.multi_reduction <add>, %8, %cst_4 [1] : vector<8x32xf32> to vector<8xf32>
    %10 = vector.shape_cast %9 : vector<8xf32> to vector<8x1xf32>
    %11 = arith.mulf %4, %4 : vector<8x32xf32>
    %cst_5 = arith.constant dense<0.000000e+00> : vector<8xf32>
    %12 = vector.multi_reduction <add>, %11, %cst_5 [1] : vector<8x32xf32> to vector<8xf32>
    %13 = vector.shape_cast %12 : vector<8xf32> to vector<8x1xf32>
    %14 = arith.mulf %10, %13 : vector<8x1xf32>
    %cst_6 = arith.constant 9.99999996E-13 : f32
    %15 = vector.broadcast %cst_6 : f32 to vector<8x1xf32>
    %16 = arith.maximumf %14, %15 : vector<8x1xf32>
    %17 = math.rsqrt %16 : vector<8x1xf32>
    %18 = arith.mulf %7, %17 : vector<8x1xf32>
    %c0_7 = arith.constant 0 : index
    %c0_8 = arith.constant 0 : index
    %19 = vector.load %arg3[%c0_7, %c0_8] : memref<8x32xf32, #tpu.memory_space<vmem>>, vector<8x32xf32>
    %c0_9 = arith.constant 0 : index
    %c0_10 = arith.constant 0 : index
    %20 = vector.load %arg4[%c0_9, %c0_10] : memref<8x32xf32, #tpu.memory_space<vmem>>, vector<8x32xf32>
    %21 = arith.mulf %19, %20 : vector<8x32xf32>
    %cst_11 = arith.constant dense<0.000000e+00> : vector<8xf32>
    %22 = vector.multi_reduction <add>, %21, %cst_11 [1] : vector<8x32xf32> to vector<8xf32>
    %23 = vector.shape_cast %22 : vector<8xf32> to vector<8x1xf32>
    %24 = arith.mulf %19, %19 : vector<8x32xf32>
    %cst_12 = arith.constant dense<0.000000e+00> : vector<8xf32>
    %25 = vector.multi_reduction <add>, %24, %cst_12 [1] : vector<8x32xf32> to vector<8xf32>
    %26 = vector.shape_cast %25 : vector<8xf32> to vector<8x1xf32>
    %27 = arith.mulf %20, %20 : vector<8x32xf32>
    %cst_13 = arith.constant dense<0.000000e+00> : vector<8xf32>
    %28 = vector.multi_reduction <add>, %27, %cst_13 [1] : vector<8x32xf32> to vector<8xf32>
    %29 = vector.shape_cast %28 : vector<8xf32> to vector<8x1xf32>
    %30 = arith.mulf %26, %29 : vector<8x1xf32>
    %cst_14 = arith.constant 9.99999996E-13 : f32
    %31 = vector.broadcast %cst_14 : f32 to vector<8x1xf32>
    %32 = arith.maximumf %30, %31 : vector<8x1xf32>
    %33 = math.rsqrt %32 : vector<8x1xf32>
    %34 = arith.mulf %23, %33 : vector<8x1xf32>
    %35 = arith.addf %18, %34 : vector<8x1xf32>
    %c0_15 = arith.constant 0 : index
    %c0_16 = arith.constant 0 : index
    %36 = vector.load %arg6[%c0_15, %c0_16] : memref<1x1xf32, #tpu.memory_space<vmem>>, vector<1x1xf32>
    %cst_17 = arith.constant dense<0.000000e+00> : vector<1xf32>
    %37 = vector.multi_reduction <add>, %35, %cst_17 [0] : vector<8x1xf32> to vector<1xf32>
    %38 = vector.shape_cast %37 : vector<1xf32> to vector<1x1xf32>
    %39 = arith.addf %36, %38 : vector<1x1xf32>
    %c0_18 = arith.constant 0 : index
    %c0_19 = arith.constant 0 : index
    %40 = vector.load %arg6[%c0_18, %c0_19] : memref<1x1xf32, #tpu.memory_space<vmem>>, vector<1x1xf32>
    tpu.vector_store %arg6[%c0_18, %c0_19], %39 {strides = array<i32>} : memref<1x1xf32, #tpu.memory_space<vmem>>, vector<1x1xf32>,
    %c0_i32_20 = arith.constant 0 : i32
    %41 = arith.cmpi eq, %arg0, %c0_i32_20 : i32
    %42 = arith.extui %41 : i1 to i32
    %c0_i32_21 = arith.constant 0 : i32
    %43 = arith.cmpi ne, %42, %c0_i32_21 : i32
    scf.if %43 {
      %c0_22 = arith.constant 0 : index
      %c0_23 = arith.constant 0 : index
      %44 = vector.load %arg6[%c0_22, %c0_23] : memref<1x1xf32, #tpu.memory_space<vmem>>, vector<1x1xf32>
      %cst_24 = arith.constant -6.250000e-02 : f32
      %45 = vector.broadcast %cst_24 : f32 to vector<1x1xf32>
      %46 = arith.mulf %44, %45 : vector<1x1xf32>
      %c0_25 = arith.constant 0 : index
      %c0_26 = arith.constant 0 : index
      %47 = vector.load %arg5[%c0_25, %c0_26] : memref<1x1xf32, #tpu.memory_space<vmem>>, vector<1x1xf32>
      tpu.vector_store %arg5[%c0_25, %c0_26], %46 {strides = array<i32>} : memref<1x1xf32, #tpu.memory_space<vmem>>, vector<1x1xf32>,
    } else {
    }
    return
  }
  func.func @transform_0(%arg0: i32) -> (i32, i32) {
    %c0_i32 = arith.constant 0 : i32
    %c0_i32_0 = arith.constant 0 : i32
    return %arg0, %c0_i32 : i32, i32
  }
  func.func @transform_1(%arg0: i32) -> (i32, i32) {
    %c0_i32 = arith.constant 0 : i32
    %c0_i32_0 = arith.constant 0 : i32
    return %arg0, %c0_i32 : i32, i32
  }
  func.func @transform_2(%arg0: i32) -> (i32, i32) {
    %c0_i32 = arith.constant 0 : i32
    %c0_i32_0 = arith.constant 0 : i32
    return %arg0, %c0_i32 : i32, i32
  }
  func.func @transform_3(%arg0: i32) -> (i32, i32) {
    %c0_i32 = arith.constant 0 : i32
    %c0_i32_0 = arith.constant 0 : i32
    return %arg0, %c0_i32 : i32, i32
  }
  func.func @transform_4(%arg0: i32) -> (i32, i32) {
    %c0_i32 = arith.constant 0 : i32
    %c0_i32_0 = arith.constant 0 : i32
    %c0_i32_1 = arith.constant 0 : i32
    return %c0_i32, %c0_i32_0 : i32, i32
  }
}

</mosaic_0001>

<llo_original>
// kernel: tpu_custom_call.1
$region0: #{tpu_custom_call.1}
  #allocation0 [shape = 'u32[]', space=smem, size = 0x4, offset = 0x4, fixed_abs, tag = 'smem constant byte address 0x4 - core index']
  #allocation1 [shape = 'u32[144,128]{1,0:T(1,128)}', space=vmem, size = 0x12000, scoped, tag = 'internal scratch']
  #allocation2 [shape = 'f32[1,1]{1,0:T(1,128)}', space=vmem, size = 0x200, scoped, tag = 'scratch operand']
  %s0 = inlined_call_operand.hbm [shape: f32[8,32], index: 0, kind: input, shape index: {}]
  %s1 = inlined_call_operand.hbm [shape: f32[8,32], index: 1, kind: input, shape index: {}]
  %s2 = inlined_call_operand.hbm [shape: f32[8,32], index: 2, kind: input, shape index: {}]
  %s3 = inlined_call_operand.vmem [shape: f32[8,32], index: 3, kind: input, shape index: {}]
  %s4 = inlined_call_operand.hbm [shape: f32[1,1], index: 4, kind: output, shape index: {}]
  %s5 = sld [smem:[#allocation0]]
  $region46: #{tpu_custom_call.1} parent=0
    _
  %s7 = ssub.s32 1, %s5
  %s8 = scalar_select 0, %s7, %s5
  $region1: #{tpu_custom_call.1} parent=0
    #allocation3 [shape = 'u8[4096]{0}', space=vmem, size = 0x1000, scoped, tag = 'input window, operand 0, single buffered']
    #allocation4 [shape = 's32[1]{0}', space=sflag, size = 0x4, scoped, tag = 'scoped memory for tpu_custom_call.1']
    #allocation5 [shape = 's32[1]{0}', space=sflag, size = 0x4, scoped, tag = 'scoped memory for tpu_custom_call.1']
    #allocation6 [shape = 'u8[4096]{0}', space=vmem, size = 0x1000, scoped, tag = 'input window, operand 1, single buffered']
    #allocation7 [shape = 's32[1]{0}', space=sflag, size = 0x4, scoped, tag = 'scoped memory for tpu_custom_call.1']
    #allocation8 [shape = 'u8[4096]{0}', space=vmem, size = 0x1000, scoped, tag = 'input window, operand 2, single buffered']
    #allocation9 [shape = 'u8[512]{0}', space=vmem, size = 0x400, scoped, tag = 'output window, operand 0, single buffered']
    %9 = vsyncpa [#allocation4], 0
    %10 = vsyncpa [#allocation7], 0
    %11 = vsyncpa [#allocation5], 0
    // Predicated region
    $region2: #{tpu_custom_call.1} parent=1 // pred_check
      _
    $region3: #{tpu_custom_call.1} parent=1 // pred_check_branch
      %13 = sbr.rel (0) target = $region5
    $region4: #{tpu_custom_call.1} parent=1 // pred_region
      %s15 = ssub.s32 128, 128
      %16 = vsyncadd [#allocation4], %s15
      %s18 = sshll.u32 [#allocation3], 4
      %s19 = int_to_ptr.vmem [resolvable:$true] %s18
      %21 = dma.hbm_to_vmem [thread:$0]  %s0, 128, %s19, [#allocation4]
    $region5: #{tpu_custom_call.1} parent=1 // pred_fallthru
      _
    // Predicated region
    $region6: #{tpu_custom_call.1} parent=1 // pred_check
      _
    $region7: #{tpu_custom_call.1} parent=1 // pred_check_branch
      %23 = sbr.rel (0) target = $region9
    $region8: #{tpu_custom_call.1} parent=1 // pred_region
      %s25 = ssub.s32 128, 128
      %26 = vsyncadd [#allocation7], %s25
      %s28 = sshll.u32 [#allocation6], 4
      %s29 = int_to_ptr.vmem [resolvable:$true] %s28
      %31 = dma.hbm_to_vmem [thread:$0]  %s1, 128, %s29, [#allocation7]
    $region9: #{tpu_custom_call.1} parent=1 // pred_fallthru
      _
    // Predicated region
    $region10: #{tpu_custom_call.1} parent=1 // pred_check
      _
    $region11: #{tpu_custom_call.1} parent=1 // pred_check_branch
      %33 = sbr.rel (0) target = $region13
    $region12: #{tpu_custom_call.1} parent=1 // pred_region
      %s35 = ssub.s32 128, 128
      %36 = vsyncadd [#allocation7], %s35
      %s38 = sshll.u32 [#allocation8], 4
      %s39 = int_to_ptr.vmem [resolvable:$true] %s38
      %41 = dma.hbm_to_vmem [thread:$0]  %s2, 128, %s39, [#allocation7]
    $region13: #{tpu_custom_call.1} parent=1 // pred_fallthru
      _
    // Predicated region
    $region14: #{tpu_custom_call.1} parent=1 // pred_check
      _
    $region15: #{tpu_custom_call.1} parent=1 // pred_check_branch
      %43 = sbr.rel (0) target = $region17
    $region16: #{tpu_custom_call.1} parent=1 // pred_region
      _
    $region17: #{tpu_custom_call.1} parent=1 // pred_fallthru
      _
    // Predicated region
    $region18: #{tpu_custom_call.1} parent=1 // pred_check
      _
    $region19: #{tpu_custom_call.1} parent=1 // pred_check_branch
      %45 = sbr.rel (0) target = $region21
    $region20: #{tpu_custom_call.1} parent=1 // pred_region
      %46 = dma.done [#allocation4], 128
    $region21: #{tpu_custom_call.1} parent=1 // pred_fallthru
      _
    // Predicated region
    $region22: #{tpu_custom_call.1} parent=1 // pred_check
      _
    $region23: #{tpu_custom_call.1} parent=1 // pred_check_branch
      %48 = sbr.rel (0) target = $region25
    $region24: #{tpu_custom_call.1} parent=1 // pred_region
      %49 = dma.done [#allocation7], 128
    $region25: #{tpu_custom_call.1} parent=1 // pred_fallthru
      _
    // Predicated region
    $region26: #{tpu_custom_call.1} parent=1 // pred_check
      _
    $region27: #{tpu_custom_call.1} parent=1 // pred_check_branch
      %51 = sbr.rel (0) target = $region29
    $region28: #{tpu_custom_call.1} parent=1 // pred_region
      %52 = dma.done [#allocation7], 128
    $region29: #{tpu_custom_call.1} parent=1 // pred_fallthru
      _
    %p53 = scmp.eq.s32.totalorder 0, 0
    // Predicated region
    $region30: #{tpu_custom_call.1} parent=1 // pred_check
      %p54 = pneg %p53
    $region31: #{tpu_custom_call.1} parent=1 // pred_check_branch
      %56 = sbr.rel (%p54) target = $region33
    $region32: #{tpu_custom_call.1} parent=1 // pred_region
      %vm57 = vcmask 0
      %58 = vst.msk [vmem:[#allocation2] sm:$0x1] %vm57, 0.0
    $region33: #{tpu_custom_call.1} parent=1 // pred_fallthru
      _
    %v59 = vld [vmem:[#allocation3] sm:$0xff]
    %v60 = vld [vmem:[#allocation6] sm:$0xff]
    %v61 = vmul.f32 %v59, %v60
    %vm62 = vcmask 261120
    %v63 = vsel %vm62, %v61, 0.0
    %64 = vadd.xlane.f32.xlu0 %v63
    %v65 = vpop.xlane.xlu0 %64
    %v66 = vmul.f32 %v59, %v59
    %v67 = vsel %vm62, %v66, 0.0
    %68 = vadd.xlane.f32.xlu0 %v67
    %v69 = vpop.xlane.xlu0 %68
    %v70 = vmul.f32 %v60, %v60
    %v71 = vsel %vm62, %v70, 0.0
    %72 = vadd.xlane.f32.xlu0 %v71
    %v73 = vpop.xlane.xlu0 %72
    %v74 = vmul.f32 %v69, %v73
    %v75 = vmax.f32 %v74, 1e-12
    %v76 = vrsqrt.pop %v75
    %v77 = vmul.f32 %v65, %v76
    %v78 = vld [vmem:[#allocation8] sm:$0xff]
    %v79 = vld [vmem:[%s3] sm:$0xff]
    %v80 = vmul.f32 %v78, %v79
    %v81 = vsel %vm62, %v80, 0.0
    %82 = vadd.xlane.f32.xlu0 %v81
    %v83 = vpop.xlane.xlu0 %82
    %v84 = vmul.f32 %v78, %v78
    %v85 = vsel %vm62, %v84, 0.0
    %86 = vadd.xlane.f32.xlu0 %v85
    %v87 = vpop.xlane.xlu0 %86
    %v88 = vmul.f32 %v79, %v79
    %v89 = vsel %vm62, %v88, 0.0
    %90 = vadd.xlane.f32.xlu0 %v89
    %v91 = vpop.xlane.xlu0 %90
    %v92 = vmul.f32 %v87, %v91
    %v93 = vmax.f32 %v92, 1e-12
    %v94 = vrsqrt.pop %v93
    %v95 = vmul.f32 %v83, %v94
    %v96 = vadd.f32 %v77, %v95
    %v97 = vld [vmem:[#allocation2] sm:$0x1]
    %v98 = vrot.slane %v96, 4
    %v99 = vadd.f32 %v96, %v98
    %v100 = vrot.slane %v99, 2
    %v101 = vadd.f32 %v99, %v100
    %v102 = vrot.slane %v101, 1
    %v103 = vadd.f32 %v101, %v102
    %v104 = vadd.f32 %v97, %v103
    %vm105 = vcmask 0
    %106 = vst.msk [vmem:[#allocation2] sm:$0x1] %vm105, %v104
    // Predicated region
    $region34: #{tpu_custom_call.1} parent=1 // pred_check
      %p107 = pneg %p53
    $region35: #{tpu_custom_call.1} parent=1 // pred_check_branch
      %109 = sbr.rel (%p107) target = $region37
    $region36: #{tpu_custom_call.1} parent=1 // pred_region
      %v110 = vld [vmem:[#allocation2] sm:$0x1]
      %v111 = vmul.f32 %v110, -0.0625
      %112 = vst.msk [vmem:[#allocation9] sm:$0x1] %vm105, %v111
    $region37: #{tpu_custom_call.1} parent=1 // pred_fallthru
      _
    // Predicated region
    $region38: #{tpu_custom_call.1} parent=1 // pred_check
      _
    $region39: #{tpu_custom_call.1} parent=1 // pred_check_branch
      %114 = sbr.rel (0) target = $region41
    $region40: #{tpu_custom_call.1} parent=1 // pred_region
      %s116 = ssub.s32 16, 16
      %117 = vsyncadd [#allocation5], %s116
      %s119 = sshll.u32 [#allocation9], 4
      %s120 = int_to_ptr.vmem [resolvable:$true] %s119
      %122 = dma.vmem_to_hbm [thread:$0]  %s120, 16, %s4, [#allocation5]
    $region41: #{tpu_custom_call.1} parent=1 // pred_fallthru
      _
    // Predicated region
    $region42: #{tpu_custom_call.1} parent=1 // pred_check
      _
    $region43: #{tpu_custom_call.1} parent=1 // pred_check_branch
      %124 = sbr.rel (0) target = $region45
    $region44: #{tpu_custom_call.1} parent=1 // pred_region
      %125 = dma.done [#allocation5], 16
    $region45: #{tpu_custom_call.1} parent=1 // pred_fallthru
      _
    %126 = vsyncpa [#allocation4], 1
    %127 = vsyncpa [#allocation7], 1
    %128 = vsyncpa [#allocation5], 1

</llo_original>
